<compile_context>
chip_gen: v7x
topology: tpu7x:2x2x1
jax: 0.10.0
libtpu: 0.0.40
codegen_flags: <defaults>
</compile_context>

<pallas_src>
import jax
import jax.numpy as jnp
from jax.experimental import pallas as pl
from jax.experimental.pallas import tpu as pltpu


def _round_up(n, m):
    return ((n + m - 1) // m) * m


def adapter_mask_kernel(x_ref, w1_ref, b1_ref, g1_ref, w2_ref, b2_ref, g2_ref,
                        o_ref):
    # x_ref : (tm, H)   input rows, native dtype
    # w1_ref: (H, Ap)   bf16 fc1 weight (transposed, A padded to Ap)
    # b1_ref: (1, Ap)   f32  fc1 bias
    # g1_ref: (1, Ap)   f32  sigmoid task gate for fc1
    # w2_ref: (Ap, H)   bf16 fc2 weight (transposed)
    # b2_ref: (1, H)    f32  fc2 bias
    # g2_ref: (1, H)    f32  sigmoid task gate for fc2
    # o_ref : (tm, H)   x + gated adapter features, same dtype as x
    cdt = w1_ref.dtype

    # fc1: MXU in bf16, accumulate f32; bias + relu + gate in f32 (VPU).
    h = jnp.dot(x_ref[...].astype(cdt), w1_ref[...],
                preferred_element_type=jnp.float32)
    h = jnp.maximum(h + b1_ref[...], 0.0) * g1_ref[...]

    # fc2
    h = jnp.dot(h.astype(cdt), w2_ref[...], preferred_element_type=jnp.float32)
    h = jnp.maximum(h + b2_ref[...], 0.0) * g2_ref[...]

    # Residual: reload x here (keeps its live range short), add in f32,
    # single cast on store.
    o_ref[...] = (x_ref[...].astype(jnp.float32) + h).astype(o_ref.dtype)


def pack_adapter_weights(params, *, compute_dtype=jnp.bfloat16):
    """Transpose / pad / bf16-cast the adapter weights.

    Depends only on `params`: compute it once (or jit+cache it) and reuse it
    across forward calls so this is not per-call HBM traffic.
    """
    A, H = params["fc1_w"].shape            # torch Linear stores (out, in)
    Ap = _round_up(A, 128)                  # lane-dense (tm, Ap) intermediate
    w1 = jnp.pad(params["fc1_w"].astype(jnp.float32).T, ((0, 0), (0, Ap - A)))
    w2 = jnp.pad(params["fc2_w"].astype(jnp.float32).T, ((0, Ap - A), (0, 0)))
    b1 = jnp.pad(params["fc1_b"].astype(jnp.float32), (0, Ap - A))[None, :]
    b2 = params["fc2_b"].astype(jnp.float32)[None, :]
    return {"w1": w1.astype(compute_dtype), "b1": b1,
            "w2": w2.astype(compute_dtype), "b2": b2}


def bert_adapter_mask(x, params, t, s, *, packed=None, tm=512,
                      compute_dtype=jnp.bfloat16):
    """x: [B, S, H]. Returns x + task-gated adapter features, same shape/dtype."""
    B, S, H = x.shape
    M = B * S
    if packed is None:
        # TODO(synk): in a real model, call pack_adapter_weights once at init
        # and pass `packed=` so the transpose/pad/cast is not repeated per call.
        packed = pack_adapter_weights(params, compute_dtype=compute_dtype)
    w1, b1, w2, b2 = packed["w1"], packed["b1"], packed["w2"], packed["b2"]
    Ap = w1.shape[1]
    A = params["efc1"].shape[1]

    # Per-call task gates (tiny): sigmoid(s * e[t]), applied post-relu in-kernel.
    g1 = jax.nn.sigmoid(jnp.float32(s) * params["efc1"][t].astype(jnp.float32))
    g2 = jax.nn.sigmoid(jnp.float32(s) * params["efc2"][t].astype(jnp.float32))
    g1 = jnp.pad(g1, (0, Ap - A))[None, :]
    g2 = g2[None, :]

    # Row tile: multiple of 16 (bf16 sublane packing); keep >= 4 grid steps so
    # both v7x TensorCores get >= 2 steps each (DMA/compute overlap).
    tm_eff = min(_round_up(min(tm, M), 16),
                 max(16, _round_up(pl.cdiv(M, 4), 16)))
    Mp = _round_up(M, tm_eff)
    grid = (Mp // tm_eff,)

    # No wrapper cast/pad copy of x in the common case (M % tm_eff == 0);
    # H never needs padding because every block spans the full H extent.
    x2d = x.reshape(M, H)
    if Mp != M:
        x2d = jnp.pad(x2d, ((0, Mp - M), (0, 0)))

    # VMEM budget: computed need + headroom (v7x has only 64 MiB per TC).
    itemsize = x.dtype.itemsize
    wbytes = jnp.dtype(compute_dtype).itemsize
    need = (2 * 2 * tm_eff * H * itemsize          # x + out blocks, double-buffered
            + 2 * H * Ap * wbytes                  # W1 + W2 (single copy each)
            + 2 * (2 * Ap + 2 * H) * 4             # biases + gates
            + 2 * tm_eff * Ap * 4)                 # f32 intermediates
    vmem_limit = int(min(max(need + (8 << 20), 16 << 20), 56 << 20))

    def run(const_mode):
        def const_spec(shape):
            kw = {} if const_mode is None else {"pipeline_mode": const_mode}
            return pl.BlockSpec(shape, lambda i: (0, 0), **kw)

        return pl.pallas_call(
            adapter_mask_kernel,
            out_shape=jax.ShapeDtypeStruct((Mp, H), x.dtype),
            grid=grid,
            in_specs=[
                pl.BlockSpec((tm_eff, H), lambda i: (i, 0)),   # x rows
                const_spec((H, Ap)),                           # W1
                const_spec((1, Ap)),                           # b1
                const_spec((1, Ap)),                           # gfc1
                const_spec((Ap, H)),                           # W2
                const_spec((1, H)),                            # b2
                const_spec((1, H)),                            # gfc2
            ],
            out_specs=pl.BlockSpec((tm_eff, H), lambda i: (i, 0)),
            compiler_params=pltpu.CompilerParams(
                dimension_semantics=("parallel",),             # megacore / v7x
                vmem_limit_bytes=vmem_limit,
            ),
        )(x2d, w1, b1, g1, w2, b2, g2)

    try:
        # Constant index_map => fetched once; single-buffer to save VMEM.
        out2d = run(pl.Buffered(1))
    except Exception:
        out2d = run(None)   # portability fallback: default double-buffering

    if Mp != M:
        out2d = out2d[:M]
    return out2d.reshape(B, S, H)


def reference(x, params, t, s):
    """Pure-JAX f32 reference mirroring the PyTorch forward."""
    gfc1 = jax.nn.sigmoid(s * params["efc1"][t])[None, :]
    gfc2 = jax.nn.sigmoid(s * params["efc2"][t])[None, :]
    B, S, H = x.shape
    x2d = x.reshape(-1, H)
    h = jnp.maximum(x2d @ params["fc1_w"].T + params["fc1_b"], 0.0) * gfc1
    h = jnp.maximum(h @ params["fc2_w"].T + params["fc2_b"], 0.0) * gfc2
    return (x2d + h).reshape(B, S, H)


if __name__ == "__main__":
    # Small shapes consistent with the module (scaled-down hidden/adapter).
    B, S, H, A = 2, 8, 32, 64
    ntasks = 3
    t = 1
    s = 4.0

    key = jax.random.PRNGKey(0)
    k = jax.random.split(key, 7)
    params = {
        "fc1_w": jax.random.normal(k[0], (A, H), jnp.float32) * 0.05,  # torch (out,in)
        "fc1_b": jax.random.normal(k[1], (A,), jnp.float32) * 0.05,
        "fc2_w": jax.random.normal(k[2], (H, A), jnp.float32) * 0.05,
        "fc2_b": jax.random.normal(k[3], (H,), jnp.float32) * 0.05,
        "efc1": jax.random.normal(k[4], (ntasks, A), jnp.float32),
        "efc2": jax.random.normal(k[5], (ntasks, H), jnp.float32),
    }
    x = jax.random.normal(k[6], (B, S, H), jnp.float32)

    packed = pack_adapter_weights(params)   # once; reusable across calls
    out = bert_adapter_mask(x, params, t, s, packed=packed)
    out = jax.block_until_ready(out)

    ref = reference(x, params, t, s)
    assert out.shape == (B, S, H) and out.dtype == x.dtype
    # bf16 matmul operands => looser tolerance vs the f32 reference
    assert jnp.allclose(out, ref, atol=2e-2, rtol=2e-2), "mismatch vs reference"
    print("KERNEL_OK")
</pallas_src>

<mosaic_0001>
module attributes {stable_mosaic.version = 11 : i64} {
  func.func @adapter_mask_kernel(%arg0: i32, %arg1: memref<16x32xf32, #tpu.memory_space<vmem>>, %arg2: memref<32x128xbf16, #tpu.memory_space<vmem>>, %arg3: memref<1x128xf32, #tpu.memory_space<vmem>>, %arg4: memref<1x128xf32, #tpu.memory_space<vmem>>, %arg5: memref<128x32xbf16, #tpu.memory_space<vmem>>, %arg6: memref<1x32xf32, #tpu.memory_space<vmem>>, %arg7: memref<1x32xf32, #tpu.memory_space<vmem>>, %arg8: memref<16x32xf32, #tpu.memory_space<vmem>>) attributes {dimension_semantics = [#tpu.dimension_semantics<parallel>], iteration_bounds = array<i64: 1>, scalar_prefetch = 0 : i64, scratch_operands = 0 : i64, tpu.core_type = #tpu.core_type<tc>, window_params = [{transform_indices = @transform_0, window_bounds = array<i64: 16, 32>}, {pipeline_mode = #tpu.pipeline_mode<synchronous>, transform_indices = @transform_1, window_bounds = array<i64: 32, 128>}, {pipeline_mode = #tpu.pipeline_mode<synchronous>, transform_indices = @transform_2, window_bounds = array<i64: 1, 128>}, {pipeline_mode = #tpu.pipeline_mode<synchronous>, transform_indices = @transform_3, window_bounds = array<i64: 1, 128>}, {pipeline_mode = #tpu.pipeline_mode<synchronous>, transform_indices = @transform_4, window_bounds = array<i64: 128, 32>}, {pipeline_mode = #tpu.pipeline_mode<synchronous>, transform_indices = @transform_5, window_bounds = array<i64: 1, 32>}, {pipeline_mode = #tpu.pipeline_mode<synchronous>, transform_indices = @transform_6, window_bounds = array<i64: 1, 32>}, {transform_indices = @transform_7, window_bounds = array<i64: 16, 32>}]} {
    %c0 = arith.constant 0 : index
    %c0_0 = arith.constant 0 : index
    %0 = vector.load %arg1[%c0, %c0_0] : memref<16x32xf32, #tpu.memory_space<vmem>>, vector<16x32xf32>
    %1 = arith.truncf %0 : vector<16x32xf32> to vector<16x32xbf16>
    %c0_1 = arith.constant 0 : index
    %c0_2 = arith.constant 0 : index
    %2 = vector.load %arg2[%c0_1, %c0_2] : memref<32x128xbf16, #tpu.memory_space<vmem>>, vector<32x128xbf16>
    %cst = arith.constant dense<0.000000e+00> : vector<16x128xf32>
    %3 = tpu.matmul %1, %2, %cst {dimension_numbers = #tpu.dot_dimension_numbers<[1], [0], [0], [1], [0, 0, 1, 1], [], []>} : vector<16x32xbf16>, vector<32x128xbf16>, vector<16x128xf32> -> vector<16x128xf32>
    %c0_3 = arith.constant 0 : index
    %c0_4 = arith.constant 0 : index
    %4 = vector.load %arg3[%c0_3, %c0_4] : memref<1x128xf32, #tpu.memory_space<vmem>>, vector<1x128xf32>
    %5 = vector.broadcast %4 : vector<1x128xf32> to vector<16x128xf32>
    %6 = arith.addf %3, %5 : vector<16x128xf32>
    %cst_5 = arith.constant 0.000000e+00 : f32
    %7 = vector.broadcast %cst_5 : f32 to vector<16x128xf32>
    %8 = arith.maximumf %6, %7 : vector<16x128xf32>
    %c0_6 = arith.constant 0 : index
    %c0_7 = arith.constant 0 : index
    %9 = vector.load %arg4[%c0_6, %c0_7] : memref<1x128xf32, #tpu.memory_space<vmem>>, vector<1x128xf32>
    %10 = vector.broadcast %9 : vector<1x128xf32> to vector<16x128xf32>
    %11 = arith.mulf %8, %10 : vector<16x128xf32>
    %12 = arith.truncf %11 : vector<16x128xf32> to vector<16x128xbf16>
    %c0_8 = arith.constant 0 : index
    %c0_9 = arith.constant 0 : index
    %13 = vector.load %arg5[%c0_8, %c0_9] : memref<128x32xbf16, #tpu.memory_space<vmem>>, vector<128x32xbf16>
    %cst_10 = arith.constant dense<0.000000e+00> : vector<16x32xf32>
    %14 = tpu.matmul %12, %13, %cst_10 {dimension_numbers = #tpu.dot_dimension_numbers<[1], [0], [0], [1], [0, 0, 1, 1], [], []>} : vector<16x128xbf16>, vector<128x32xbf16>, vector<16x32xf32> -> vector<16x32xf32>
    %c0_11 = arith.constant 0 : index
    %c0_12 = arith.constant 0 : index
    %15 = vector.load %arg6[%c0_11, %c0_12] : memref<1x32xf32, #tpu.memory_space<vmem>>, vector<1x32xf32>
    %16 = vector.broadcast %15 : vector<1x32xf32> to vector<16x32xf32>
    %17 = arith.addf %14, %16 : vector<16x32xf32>
    %cst_13 = arith.constant 0.000000e+00 : f32
    %18 = vector.broadcast %cst_13 : f32 to vector<16x32xf32>
    %19 = arith.maximumf %17, %18 : vector<16x32xf32>
    %c0_14 = arith.constant 0 : index
    %c0_15 = arith.constant 0 : index
    %20 = vector.load %arg7[%c0_14, %c0_15] : memref<1x32xf32, #tpu.memory_space<vmem>>, vector<1x32xf32>
    %21 = vector.broadcast %20 : vector<1x32xf32> to vector<16x32xf32>
    %22 = arith.mulf %19, %21 : vector<16x32xf32>
    %c0_16 = arith.constant 0 : index
    %c0_17 = arith.constant 0 : index
    %23 = vector.load %arg1[%c0_16, %c0_17] : memref<16x32xf32, #tpu.memory_space<vmem>>, vector<16x32xf32>
    %24 = arith.addf %23, %22 : vector<16x32xf32>
    %c0_18 = arith.constant 0 : index
    %c0_19 = arith.constant 0 : index
    %25 = vector.load %arg8[%c0_18, %c0_19] : memref<16x32xf32, #tpu.memory_space<vmem>>, vector<16x32xf32>
    tpu.vector_store %arg8[%c0_18, %c0_19], %24 {strides = array<i32>} : memref<16x32xf32, #tpu.memory_space<vmem>>, vector<16x32xf32>,
    return
  }
  func.func @transform_0(%arg0: i32) -> (i32, i32) {
    %c0_i32 = arith.constant 0 : i32
    %c0_i32_0 = arith.constant 0 : i32
    return %arg0, %c0_i32 : i32, i32
  }
  func.func @transform_1(%arg0: i32) -> (i32, i32) {
    %c0_i32 = arith.constant 0 : i32
    %c0_i32_0 = arith.constant 0 : i32
    %c0_i32_1 = arith.constant 0 : i32
    return %c0_i32, %c0_i32_0 : i32, i32
  }
  func.func @transform_2(%arg0: i32) -> (i32, i32) {
    %c0_i32 = arith.constant 0 : i32
    %c0_i32_0 = arith.constant 0 : i32
    %c0_i32_1 = arith.constant 0 : i32
    return %c0_i32, %c0_i32_0 : i32, i32
  }
  func.func @transform_3(%arg0: i32) -> (i32, i32) {
    %c0_i32 = arith.constant 0 : i32
    %c0_i32_0 = arith.constant 0 : i32
    %c0_i32_1 = arith.constant 0 : i32
    return %c0_i32, %c0_i32_0 : i32, i32
  }
  func.func @transform_4(%arg0: i32) -> (i32, i32) {
    %c0_i32 = arith.constant 0 : i32
    %c0_i32_0 = arith.constant 0 : i32
    %c0_i32_1 = arith.constant 0 : i32
    return %c0_i32, %c0_i32_0 : i32, i32
  }
  func.func @transform_5(%arg0: i32) -> (i32, i32) {
    %c0_i32 = arith.constant 0 : i32
    %c0_i32_0 = arith.constant 0 : i32
    %c0_i32_1 = arith.constant 0 : i32
    return %c0_i32, %c0_i32_0 : i32, i32
  }
  func.func @transform_6(%arg0: i32) -> (i32, i32) {
    %c0_i32 = arith.constant 0 : i32
    %c0_i32_0 = arith.constant 0 : i32
    %c0_i32_1 = arith.constant 0 : i32
    return %c0_i32, %c0_i32_0 : i32, i32
  }
  func.func @transform_7(%arg0: i32) -> (i32, i32) {
    %c0_i32 = arith.constant 0 : i32
    %c0_i32_0 = arith.constant 0 : i32
    return %arg0, %c0_i32 : i32, i32
  }
}

module attributes {stable_mosaic.version = 11 : i64} {
  func.func @adapter_mask_kernel(%arg0: i32, %arg1: memref<16x32xf32, #tpu.memory_space<vmem>>, %arg2: memref<32x128xbf16, #tpu.memory_space<vmem>>, %arg3: memref<1x128xf32, #tpu.memory_space<vmem>>, %arg4: memref<1x128xf32, #tpu.memory_space<vmem>>, %arg5: memref<128x32xbf16, #tpu.memory_space<vmem>>, %arg6: memref<1x32xf32, #tpu.memory_space<vmem>>, %arg7: memref<1x32xf32, #tpu.memory_space<vmem>>, %arg8: memref<16x32xf32, #tpu.memory_space<vmem>>) attributes {dimension_semantics = [#tpu.dimension_semantics<parallel>], iteration_bounds = array<i64: 1>, scalar_prefetch = 0 : i64, scratch_operands = 0 : i64, tpu.core_type = #tpu.core_type<tc>, window_params = [{transform_indices = @transform_0, window_bounds = array<i64: 16, 32>}, {pipeline_mode = #tpu.pipeline_mode<synchronous>, transform_indices = @transform_1, window_bounds = array<i64: 32, 128>}, {pipeline_mode = #tpu.pipeline_mode<synchronous>, transform_indices = @transform_2, window_bounds = array<i64: 1, 128>}, {pipeline_mode = #tpu.pipeline_mode<synchronous>, transform_indices = @transform_3, window_bounds = array<i64: 1, 128>}, {pipeline_mode = #tpu.pipeline_mode<synchronous>, transform_indices = @transform_4, window_bounds = array<i64: 128, 32>}, {pipeline_mode = #tpu.pipeline_mode<synchronous>, transform_indices = @transform_5, window_bounds = array<i64: 1, 32>}, {pipeline_mode = #tpu.pipeline_mode<synchronous>, transform_indices = @transform_6, window_bounds = array<i64: 1, 32>}, {transform_indices = @transform_7, window_bounds = array<i64: 16, 32>}]} {
    %c0 = arith.constant 0 : index
    %c0_0 = arith.constant 0 : index
    %0 = vector.load %arg1[%c0, %c0_0] : memref<16x32xf32, #tpu.memory_space<vmem>>, vector<16x32xf32>
    %1 = arith.truncf %0 : vector<16x32xf32> to vector<16x32xbf16>
    %c0_1 = arith.constant 0 : index
    %c0_2 = arith.constant 0 : index
    %2 = vector.load %arg2[%c0_1, %c0_2] : memref<32x128xbf16, #tpu.memory_space<vmem>>, vector<32x128xbf16>
    %cst = arith.constant dense<0.000000e+00> : vector<16x128xf32>
    %3 = tpu.matmul %1, %2, %cst {dimension_numbers = #tpu.dot_dimension_numbers<[1], [0], [0], [1], [0, 0, 1, 1], [], []>} : vector<16x32xbf16>, vector<32x128xbf16>, vector<16x128xf32> -> vector<16x128xf32>
    %c0_3 = arith.constant 0 : index
    %c0_4 = arith.constant 0 : index
    %4 = vector.load %arg3[%c0_3, %c0_4] : memref<1x128xf32, #tpu.memory_space<vmem>>, vector<1x128xf32>
    %5 = vector.broadcast %4 : vector<1x128xf32> to vector<16x128xf32>
    %6 = arith.addf %3, %5 : vector<16x128xf32>
    %cst_5 = arith.constant 0.000000e+00 : f32
    %7 = vector.broadcast %cst_5 : f32 to vector<16x128xf32>
    %8 = arith.maximumf %6, %7 : vector<16x128xf32>
    %c0_6 = arith.constant 0 : index
    %c0_7 = arith.constant 0 : index
    %9 = vector.load %arg4[%c0_6, %c0_7] : memref<1x128xf32, #tpu.memory_space<vmem>>, vector<1x128xf32>
    %10 = vector.broadcast %9 : vector<1x128xf32> to vector<16x128xf32>
    %11 = arith.mulf %8, %10 : vector<16x128xf32>
    %12 = arith.truncf %11 : vector<16x128xf32> to vector<16x128xbf16>
    %c0_8 = arith.constant 0 : index
    %c0_9 = arith.constant 0 : index
    %13 = vector.load %arg5[%c0_8, %c0_9] : memref<128x32xbf16, #tpu.memory_space<vmem>>, vector<128x32xbf16>
    %cst_10 = arith.constant dense<0.000000e+00> : vector<16x32xf32>
    %14 = tpu.matmul %12, %13, %cst_10 {dimension_numbers = #tpu.dot_dimension_numbers<[1], [0], [0], [1], [0, 0, 1, 1], [], []>} : vector<16x128xbf16>, vector<128x32xbf16>, vector<16x32xf32> -> vector<16x32xf32>
    %c0_11 = arith.constant 0 : index
    %c0_12 = arith.constant 0 : index
    %15 = vector.load %arg6[%c0_11, %c0_12] : memref<1x32xf32, #tpu.memory_space<vmem>>, vector<1x32xf32>
    %16 = vector.broadcast %15 : vector<1x32xf32> to vector<16x32xf32>
    %17 = arith.addf %14, %16 : vector<16x32xf32>
    %cst_13 = arith.constant 0.000000e+00 : f32
    %18 = vector.broadcast %cst_13 : f32 to vector<16x32xf32>
    %19 = arith.maximumf %17, %18 : vector<16x32xf32>
    %c0_14 = arith.constant 0 : index
    %c0_15 = arith.constant 0 : index
    %20 = vector.load %arg7[%c0_14, %c0_15] : memref<1x32xf32, #tpu.memory_space<vmem>>, vector<1x32xf32>
    %21 = vector.broadcast %20 : vector<1x32xf32> to vector<16x32xf32>
    %22 = arith.mulf %19, %21 : vector<16x32xf32>
    %c0_16 = arith.constant 0 : index
    %c0_17 = arith.constant 0 : index
    %23 = vector.load %arg1[%c0_16, %c0_17] : memref<16x32xf32, #tpu.memory_space<vmem>>, vector<16x32xf32>
    %24 = arith.addf %23, %22 : vector<16x32xf32>
    %c0_18 = arith.constant 0 : index
    %c0_19 = arith.constant 0 : index
    %25 = vector.load %arg8[%c0_18, %c0_19] : memref<16x32xf32, #tpu.memory_space<vmem>>, vector<16x32xf32>
    tpu.vector_store %arg8[%c0_18, %c0_19], %24 {strides = array<i32>} : memref<16x32xf32, #tpu.memory_space<vmem>>, vector<16x32xf32>,
    return
  }
  func.func @transform_0(%arg0: i32) -> (i32, i32) {
    %c0_i32 = arith.constant 0 : i32
    %c0_i32_0 = arith.constant 0 : i32
    return %arg0, %c0_i32 : i32, i32
  }
  func.func @transform_1(%arg0: i32) -> (i32, i32) {
    %c0_i32 = arith.constant 0 : i32
    %c0_i32_0 = arith.constant 0 : i32
    %c0_i32_1 = arith.constant 0 : i32
    return %c0_i32, %c0_i32_0 : i32, i32
  }
  func.func @transform_2(%arg0: i32) -> (i32, i32) {
    %c0_i32 = arith.constant 0 : i32
    %c0_i32_0 = arith.constant 0 : i32
    %c0_i32_1 = arith.constant 0 : i32
    return %c0_i32, %c0_i32_0 : i32, i32
  }
  func.func @transform_3(%arg0: i32) -> (i32, i32) {
    %c0_i32 = arith.constant 0 : i32
    %c0_i32_0 = arith.constant 0 : i32
    %c0_i32_1 = arith.constant 0 : i32
    return %c0_i32, %c0_i32_0 : i32, i32
  }
  func.func @transform_4(%arg0: i32) -> (i32, i32) {
    %c0_i32 = arith.constant 0 : i32
    %c0_i32_0 = arith.constant 0 : i32
    %c0_i32_1 = arith.constant 0 : i32
    return %c0_i32, %c0_i32_0 : i32, i32
  }
  func.func @transform_5(%arg0: i32) -> (i32, i32) {
    %c0_i32 = arith.constant 0 : i32
    %c0_i32_0 = arith.constant 0 : i32
    %c0_i32_1 = arith.constant 0 : i32
    return %c0_i32, %c0_i32_0 : i32, i32
  }
  func.func @transform_6(%arg0: i32) -> (i32, i32) {
    %c0_i32 = arith.constant 0 : i32
    %c0_i32_0 = arith.constant 0 : i32
    %c0_i32_1 = arith.constant 0 : i32
    return %c0_i32, %c0_i32_0 : i32, i32
  }
  func.func @transform_7(%arg0: i32) -> (i32, i32) {
    %c0_i32 = arith.constant 0 : i32
    %c0_i32_0 = arith.constant 0 : i32
    return %arg0, %c0_i32 : i32, i32
  }
}

</mosaic_0001>

<llo_original>
// kernel: tpu_custom_call.1
$region0: #{tpu_custom_call.1}
  #allocation0 [shape = 'u32[]', space=smem, size = 0x4, offset = 0x4, fixed_abs, tag = 'smem constant byte address 0x4 - core index']
  #allocation1 [shape = 'u32[144,128]{1,0:T(1,128)}', space=vmem, size = 0x12000, scoped, tag = 'internal scratch']
  %s0 = inlined_call_operand.vmem [shape: f32[16,32], index: 0, kind: input, shape index: {}]
  %s1 = inlined_call_operand.vmem [shape: bf16[32,128], index: 1, kind: input, shape index: {}]
  %s2 = inlined_call_operand.vmem [shape: f32[1,128], index: 2, kind: input, shape index: {}]
  %s3 = inlined_call_operand.vmem [shape: f32[1,128], index: 3, kind: input, shape index: {}]
  %s4 = inlined_call_operand.vmem [shape: bf16[128,32], index: 4, kind: input, shape index: {}]
  %s5 = inlined_call_operand.vmem [shape: f32[1,32], index: 5, kind: input, shape index: {}]
  %s6 = inlined_call_operand.vmem [shape: f32[1,32], index: 6, kind: input, shape index: {}]
  %s7 = inlined_call_operand.hbm [shape: f32[16,32], index: 7, kind: output, shape index: {}]
  %s8 = sld [smem:[#allocation0]]
  $region38: #{tpu_custom_call.1} parent=0
    _
  %s10 = ssub.s32 1, %s8
  %s11 = scalar_select 0, %s10, %s8
  $region1: #{tpu_custom_call.1} parent=0
    #allocation2 [shape = 'u8[8192]{0}', space=vmem, size = 0x2000, scoped, tag = 'output window, operand 0, single buffered']
    #allocation3 [shape = 's32[1]{0}', space=sflag, size = 0x4, scoped, tag = 'scoped memory for tpu_custom_call.1']
    %12 = vsyncpa [#allocation3], 0
    // Predicated region
    $region2: #{tpu_custom_call.1} parent=1 // pred_check
      _
    $region3: #{tpu_custom_call.1} parent=1 // pred_check_branch
      %14 = sbr.rel (0) target = $region5
    $region4: #{tpu_custom_call.1} parent=1 // pred_region
      _
    $region5: #{tpu_custom_call.1} parent=1 // pred_fallthru
      _
    // Predicated region
    $region6: #{tpu_custom_call.1} parent=1 // pred_check
      _
    $region7: #{tpu_custom_call.1} parent=1 // pred_check_branch
      %16 = sbr.rel (0) target = $region9
    $region8: #{tpu_custom_call.1} parent=1 // pred_region
      _
    $region9: #{tpu_custom_call.1} parent=1 // pred_fallthru
      _
    // Predicated region
    $region10: #{tpu_custom_call.1} parent=1 // pred_check
      _
    $region11: #{tpu_custom_call.1} parent=1 // pred_check_branch
      %18 = sbr.rel (0) target = $region13
    $region12: #{tpu_custom_call.1} parent=1 // pred_region
      _
    $region13: #{tpu_custom_call.1} parent=1 // pred_fallthru
      _
    // Predicated region
    $region14: #{tpu_custom_call.1} parent=1 // pred_check
      _
    $region15: #{tpu_custom_call.1} parent=1 // pred_check_branch
      %20 = sbr.rel (0) target = $region17
    $region16: #{tpu_custom_call.1} parent=1 // pred_region
      _
    $region17: #{tpu_custom_call.1} parent=1 // pred_fallthru
      _
    // Predicated region
    $region18: #{tpu_custom_call.1} parent=1 // pred_check
      _
    $region19: #{tpu_custom_call.1} parent=1 // pred_check_branch
      %22 = sbr.rel (0) target = $region21
    $region20: #{tpu_custom_call.1} parent=1 // pred_region
      _
    $region21: #{tpu_custom_call.1} parent=1 // pred_fallthru
      _
    // Predicated region
    $region22: #{tpu_custom_call.1} parent=1 // pred_check
      _
    $region23: #{tpu_custom_call.1} parent=1 // pred_check_branch
      %24 = sbr.rel (0) target = $region25
    $region24: #{tpu_custom_call.1} parent=1 // pred_region
      _
    $region25: #{tpu_custom_call.1} parent=1 // pred_fallthru
      _
    // Predicated region
    $region26: #{tpu_custom_call.1} parent=1 // pred_check
      _
    $region27: #{tpu_custom_call.1} parent=1 // pred_check_branch
      %26 = sbr.rel (0) target = $region29
    $region28: #{tpu_custom_call.1} parent=1 // pred_region
      _
    $region29: #{tpu_custom_call.1} parent=1 // pred_fallthru
      _
    %v28 = vld [vmem:[%s0] sm:$0xff]
    %v29 = vld [vmem:[%s0 + $0x8] sm:$0xff]
    %v30 = vpack.c.bf16 %v29, %v28
    %v31 = vld [vmem:[%s1] sm:$0xf]
    %v32 = vld [vmem:[%s1 + $0x4] sm:$0xf]
    %v33 = vld [vmem:[%s1 + $0x8] sm:$0xf]
    %v34 = vld [vmem:[%s1 + $0xc] sm:$0xf]
    %v35 = vld [vmem:[%s2] sm:$0x1]
    %v37 = vlaneseq
    %v38 = vshrl.u32 %v37, 7
    %v39 = vsub.s32 0, %v38
    %v40 = vrot.slane %v35, %v39
    %v46 = vunpack.c.l.b16 %v31
    %v47 = vunpack.c.l.b16 %v32
    %v48 = vunpack.c.l.b16 %v33
    %v49 = vunpack.c.l.b16 %v34
    %v50 = vpack.c.b16 %v47, %v46
    %v51 = vpack.c.b16 %v49, %v48
    %vm54 = vcmask 261120
    %v56 = vsel %vm54, %v30, 0
    %58 = vmatprep.subr.bf16.mxu0 0
    %59 = vmatpush1.bf16.msra.mxu0 %v50
    %60 = vmatprep.subr.bf16.mxu0 0
    %61 = vmatpush1.bf16.msra.mxu0 %v51
    %62 = vmatprep.subr.bf16.mxu0 0
    %63 = vmatpush1.bf16.msra.mxu0 0
    %64 = vmatprep.subr.bf16.mxu0 0
    %65 = vmatpush1.bf16.msra.mxu0 0
    %66 = vmatprep.subr.bf16.mxu0 0
    %67 = vmatpush1.bf16.msra.mxu0 0
    %68 = vmatprep.subr.bf16.mxu0 0
    %69 = vmatpush1.bf16.msra.mxu0 0
    %70 = vmatprep.subr.bf16.mxu0 0
    %71 = vmatpush1.bf16.msra.mxu0 0
    %72 = vmatprep.subr.bf16.mxu0 0
    %73 = vmatpush1.bf16.msra.mxu0 0
    %74 = vmatprep.subr.bf16.mxu0 0
    %75 = vmatpush1.bf16.msra.mxu0 0
    %76 = vmatprep.subr.bf16.mxu0 0
    %77 = vmatpush1.bf16.msra.mxu0 0
    %78 = vmatprep.subr.bf16.mxu0 0
    %79 = vmatpush1.bf16.msra.mxu0 0
    %80 = vmatprep.subr.bf16.mxu0 0
    %81 = vmatpush1.bf16.msra.mxu0 0
    %82 = vmatprep.subr.bf16.mxu0 0
    %83 = vmatpush1.bf16.msra.mxu0 0
    %84 = vmatprep.subr.bf16.mxu0 0
    %85 = vmatpush1.bf16.msra.mxu0 0
    %86 = vmatprep.subr.bf16.mxu0 0
    %87 = vmatpush1.bf16.msra.mxu0 0
    %88 = vmatprep.subr.bf16.mxu0 0
    %89 = vmatpush1.bf16.msra.mxu0 0
    %90 = vmatprep.mubr.bf16.mxu0 0
    %91 = vmatmul.mubr.bf16.gmra.mrb[0].mxu0 %v56
    %v92 = vpop.f32.mrb[0].mxu0
    %v93 = vadd.f32 %v40, %v92
    %v94 = vpop.f32.mrb[0].mxu0
    %v95 = vpop.f32.mrb[0].mxu0
    %v96 = vadd.f32 %v40, %v95
    %v97 = vpop.f32.mrb[0].mxu0
    %98 = vdwg.mxu0
    %v99 = vmax.f32 %v93, 0.0
    %v100 = vmax.f32 %v96, 0.0
    %v101 = vld [vmem:[%s3] sm:$0x1]
    %v103 = vlaneseq
    %v104 = vshrl.u32 %v103, 7
    %v105 = vsub.s32 0, %v104
    %v106 = vrot.slane %v101, %v105
    %v108 = vmul.f32 %v99, %v106
    %v109 = vmul.f32 %v100, %v106
    %v110 = vpack.c.bf16 %v109, %v108
    %v111 = vld [vmem:[%s4] sm:$0xf]
    %v112 = vld [vmem:[%s4 + $0x4] sm:$0xf]
    %v113 = vld [vmem:[%s4 + $0x8] sm:$0xf]
    %v114 = vld [vmem:[%s4 + $0xc] sm:$0xf]
    %v115 = vld [vmem:[%s4 + $0x10] sm:$0xf]
    %v116 = vld [vmem:[%s4 + $0x14] sm:$0xf]
    %v117 = vld [vmem:[%s4 + $0x18] sm:$0xf]
    %v118 = vld [vmem:[%s4 + $0x1c] sm:$0xf]
    %v119 = vld [vmem:[%s4 + $0x20] sm:$0xf]
    %v120 = vld [vmem:[%s4 + $0x24] sm:$0xf]
    %v121 = vld [vmem:[%s4 + $0x28] sm:$0xf]
    %v122 = vld [vmem:[%s4 + $0x2c] sm:$0xf]
    %v123 = vld [vmem:[%s4 + $0x30] sm:$0xf]
    %v124 = vld [vmem:[%s4 + $0x34] sm:$0xf]
    %v125 = vld [vmem:[%s4 + $0x38] sm:$0xf]
    %v126 = vld [vmem:[%s4 + $0x3c] sm:$0xf]
    %v127 = vld [vmem:[%s5] sm:$0x1]
    %v129 = vlaneseq
    %v130 = vshrl.u32 %v129, 7
    %v131 = vsub.s32 0, %v130
    %v132 = vrot.slane %v127, %v131
    %v150 = vunpack.c.l.b16 %v111
    %v151 = vunpack.c.l.b16 %v112
    %v152 = vunpack.c.l.b16 %v113
    %v153 = vunpack.c.l.b16 %v114
    %v154 = vunpack.c.l.b16 %v115
    %v155 = vunpack.c.l.b16 %v116
    %v156 = vunpack.c.l.b16 %v117
    %v157 = vunpack.c.l.b16 %v118
    %v158 = vunpack.c.l.b16 %v119
    %v159 = vunpack.c.l.b16 %v120
    %v160 = vunpack.c.l.b16 %v121
    %v161 = vunpack.c.l.b16 %v122
    %v162 = vunpack.c.l.b16 %v123
    %v163 = vunpack.c.l.b16 %v124
    %v164 = vunpack.c.l.b16 %v125
    %v165 = vunpack.c.l.b16 %v126
    %v166 = vpack.c.b16 %v151, %v150
    %v167 = vpack.c.b16 %v153, %v152
    %v168 = vpack.c.b16 %v155, %v154
    %v169 = vpack.c.b16 %v157, %v156
    %v170 = vpack.c.b16 %v159, %v158
    %v171 = vpack.c.b16 %v161, %v160
    %v172 = vpack.c.b16 %v163, %v162
    %v173 = vpack.c.b16 %v165, %v164
    %182 = vmatprep.subr.bf16.mxu0 0
    %183 = vmatpush1.bf16.msra.mxu0 %v166
    %184 = vmatprep.subr.bf16.mxu0 0
    %185 = vmatpush1.bf16.msra.mxu0 %v167
    %186 = vmatprep.subr.bf16.mxu0 0
    %187 = vmatpush1.bf16.msra.mxu0 %v168
    %188 = vmatprep.subr.bf16.mxu0 0
    %189 = vmatpush1.bf16.msra.mxu0 %v169
    %190 = vmatprep.subr.bf16.mxu0 0
    %191 = vmatpush1.bf16.msra.mxu0 %v170
    %192 = vmatprep.subr.bf16.mxu0 0
    %193 = vmatpush1.bf16.msra.mxu0 %v171
    %194 = vmatprep.subr.bf16.mxu0 0
    %195 = vmatpush1.bf16.msra.mxu0 %v172
    %196 = vmatprep.subr.bf16.mxu0 0
    %197 = vmatpush1.bf16.msra.mxu0 %v173
    %198 = vmatprep.subr.bf16.mxu0 0
    %199 = vmatpush1.bf16.msra.mxu0 0
    %200 = vmatprep.subr.bf16.mxu0 0
    %201 = vmatpush1.bf16.msra.mxu0 0
    %202 = vmatprep.subr.bf16.mxu0 0
    %203 = vmatpush1.bf16.msra.mxu0 0
    %204 = vmatprep.subr.bf16.mxu0 0
    %205 = vmatpush1.bf16.msra.mxu0 0
    %206 = vmatprep.subr.bf16.mxu0 0
    %207 = vmatpush1.bf16.msra.mxu0 0
    %208 = vmatprep.subr.bf16.mxu0 0
    %209 = vmatpush1.bf16.msra.mxu0 0
    %210 = vmatprep.subr.bf16.mxu0 0
    %211 = vmatpush1.bf16.msra.mxu0 0
    %212 = vmatprep.subr.bf16.mxu0 0
    %213 = vmatpush1.bf16.msra.mxu0 0
    %214 = vmatprep.mubr.bf16.mxu0 0
    %215 = vmatmul.mubr.bf16.gmra.mrb[0].mxu0 %v110
    %v216 = vpop.f32.mrb[0].mxu0
    %v217 = vadd.f32 %v132, %v216
    %v218 = vpop.f32.mrb[0].mxu0
    %v219 = vpop.f32.mrb[0].mxu0
    %v220 = vadd.f32 %v132, %v219
    %v221 = vpop.f32.mrb[0].mxu0
    %222 = vdwg.mxu0
    %v223 = vmax.f32 %v217, 0.0
    %v224 = vmax.f32 %v220, 0.0
    %v225 = vld [vmem:[%s6] sm:$0x1]
    %v227 = vlaneseq
    %v228 = vshrl.u32 %v227, 7
    %v229 = vsub.s32 0, %v228
    %v230 = vrot.slane %v225, %v229
    %v232 = vmul.f32 %v223, %v230
    %v233 = vmul.f32 %v224, %v230
    %v234 = vadd.f32 %v28, %v232
    %v235 = vadd.f32 %v29, %v233
    %236 = vst.msk [vmem:[#allocation2] sm:$0xff] %vm54, %v234
    %237 = vst.msk [vmem:[#allocation2 + $0x8] sm:$0xff] %vm54, %v235
    // Predicated region
    $region30: #{tpu_custom_call.1} parent=1 // pred_check
      _
    $region31: #{tpu_custom_call.1} parent=1 // pred_check_branch
      %239 = sbr.rel (0) target = $region33
    $region32: #{tpu_custom_call.1} parent=1 // pred_region
      %s241 = ssub.s32 256, 256
      %242 = vsyncadd [#allocation3], %s241
      %s243 = sshll.u32 [#allocation2], 4
      %s244 = int_to_ptr.vmem [resolvable:$true] %s243
      %249 = dma.vmem_to_hbm [thread:$0]  %s244, 256, %s7, [#allocation3], 128, 128, 8
    $region33: #{tpu_custom_call.1} parent=1 // pred_fallthru
      _
    // Predicated region
    $region34: #{tpu_custom_call.1} parent=1 // pred_check
      _
    $region35: #{tpu_custom_call.1} parent=1 // pred_check_branch
      %251 = sbr.rel (0) target = $region37
    $region36: #{tpu_custom_call.1} parent=1 // pred_region
      %252 = dma.done [#allocation3], 256
    $region37: #{tpu_custom_call.1} parent=1 // pred_fallthru
      _
    %253 = vsyncpa [#allocation3], 1

// kernel: tpu_custom_call.1
$region0: #{tpu_custom_call.1}
  #allocation0 [shape = 'u32[]', space=smem, size = 0x4, offset = 0x4, fixed_abs, tag = 'smem constant byte address 0x4 - core index']
  #allocation1 [shape = 'u32[144,128]{1,0:T(1,128)}', space=vmem, size = 0x12000, scoped, tag = 'internal scratch']
  %s0 = inlined_call_operand.vmem [shape: f32[16,32], index: 0, kind: input, shape index: {}]
  %s1 = inlined_call_operand.vmem [shape: bf16[32,128], index: 1, kind: input, shape index: {}]
  %s2 = inlined_call_operand.vmem [shape: f32[1,128], index: 2, kind: input, shape index: {}]
  %s3 = inlined_call_operand.vmem [shape: f32[1,128], index: 3, kind: input, shape index: {}]
  %s4 = inlined_call_operand.vmem [shape: bf16[128,32], index: 4, kind: input, shape index: {}]
  %s5 = inlined_call_operand.vmem [shape: f32[1,32], index: 5, kind: input, shape index: {}]
  %s6 = inlined_call_operand.vmem [shape: f32[1,32], index: 6, kind: input, shape index: {}]
  %s7 = inlined_call_operand.hbm [shape: f32[16,32], index: 7, kind: output, shape index: {}]
  %s8 = sld [smem:[#allocation0]]
  $region38: #{tpu_custom_call.1} parent=0
    _
  %s10 = ssub.s32 1, %s8
  %s11 = scalar_select 0, %s10, %s8
  $region1: #{tpu_custom_call.1} parent=0
    #allocation2 [shape = 'u8[8192]{0}', space=vmem, size = 0x2000, scoped, tag = 'output window, operand 0, single buffered']
    #allocation3 [shape = 's32[1]{0}', space=sflag, size = 0x4, scoped, tag = 'scoped memory for tpu_custom_call.1']
    %12 = vsyncpa [#allocation3], 0
    // Predicated region
    $region2: #{tpu_custom_call.1} parent=1 // pred_check
      _
    $region3: #{tpu_custom_call.1} parent=1 // pred_check_branch
      %14 = sbr.rel (0) target = $region5
    $region4: #{tpu_custom_call.1} parent=1 // pred_region
      _
    $region5: #{tpu_custom_call.1} parent=1 // pred_fallthru
      _
    // Predicated region
    $region6: #{tpu_custom_call.1} parent=1 // pred_check
      _
    $region7: #{tpu_custom_call.1} parent=1 // pred_check_branch
      %16 = sbr.rel (0) target = $region9
    $region8: #{tpu_custom_call.1} parent=1 // pred_region
      _
    $region9: #{tpu_custom_call.1} parent=1 // pred_fallthru
      _
    // Predicated region
    $region10: #{tpu_custom_call.1} parent=1 // pred_check
      _
    $region11: #{tpu_custom_call.1} parent=1 // pred_check_branch
      %18 = sbr.rel (0) target = $region13
    $region12: #{tpu_custom_call.1} parent=1 // pred_region
      _
    $region13: #{tpu_custom_call.1} parent=1 // pred_fallthru
      _
    // Predicated region
    $region14: #{tpu_custom_call.1} parent=1 // pred_check
      _
    $region15: #{tpu_custom_call.1} parent=1 // pred_check_branch
      %20 = sbr.rel (0) target = $region17
    $region16: #{tpu_custom_call.1} parent=1 // pred_region
      _
    $region17: #{tpu_custom_call.1} parent=1 // pred_fallthru
      _
    // Predicated region
    $region18: #{tpu_custom_call.1} parent=1 // pred_check
      _
    $region19: #{tpu_custom_call.1} parent=1 // pred_check_branch
      %22 = sbr.rel (0) target = $region21
    $region20: #{tpu_custom_call.1} parent=1 // pred_region
      _
    $region21: #{tpu_custom_call.1} parent=1 // pred_fallthru
      _
    // Predicated region
    $region22: #{tpu_custom_call.1} parent=1 // pred_check
      _
    $region23: #{tpu_custom_call.1} parent=1 // pred_check_branch
      %24 = sbr.rel (0) target = $region25
    $region24: #{tpu_custom_call.1} parent=1 // pred_region
      _
    $region25: #{tpu_custom_call.1} parent=1 // pred_fallthru
      _
    // Predicated region
    $region26: #{tpu_custom_call.1} parent=1 // pred_check
      _
    $region27: #{tpu_custom_call.1} parent=1 // pred_check_branch
      %26 = sbr.rel (0) target = $region29
    $region28: #{tpu_custom_call.1} parent=1 // pred_region
      _
    $region29: #{tpu_custom_call.1} parent=1 // pred_fallthru
      _
    %v28 = vld [vmem:[%s0] sm:$0xff]
    %v29 = vld [vmem:[%s0 + $0x8] sm:$0xff]
    %v30 = vpack.c.bf16 %v29, %v28
    %v31 = vld [vmem:[%s1] sm:$0xf]
    %v32 = vld [vmem:[%s1 + $0x4] sm:$0xf]
    %v33 = vld [vmem:[%s1 + $0x8] sm:$0xf]
    %v34 = vld [vmem:[%s1 + $0xc] sm:$0xf]
    %v35 = vld [vmem:[%s2] sm:$0x1]
    %v37 = vlaneseq
    %v38 = vshrl.u32 %v37, 7
    %v39 = vsub.s32 0, %v38
    %v40 = vrot.slane %v35, %v39
    %v46 = vunpack.c.l.b16 %v31
    %v47 = vunpack.c.l.b16 %v32
    %v48 = vunpack.c.l.b16 %v33
    %v49 = vunpack.c.l.b16 %v34
    %v50 = vpack.c.b16 %v47, %v46
    %v51 = vpack.c.b16 %v49, %v48
    %vm54 = vcmask 261120
    %v56 = vsel %vm54, %v30, 0
    %58 = vmatprep.subr.bf16.mxu0 0
    %59 = vmatpush1.bf16.msra.mxu0 %v50
    %60 = vmatprep.subr.bf16.mxu0 0
    %61 = vmatpush1.bf16.msra.mxu0 %v51
    %62 = vmatprep.subr.bf16.mxu0 0
    %63 = vmatpush1.bf16.msra.mxu0 0
    %64 = vmatprep.subr.bf16.mxu0 0
    %65 = vmatpush1.bf16.msra.mxu0 0
    %66 = vmatprep.subr.bf16.mxu0 0
    %67 = vmatpush1.bf16.msra.mxu0 0
    %68 = vmatprep.subr.bf16.mxu0 0
    %69 = vmatpush1.bf16.msra.mxu0 0
    %70 = vmatprep.subr.bf16.mxu0 0
    %71 = vmatpush1.bf16.msra.mxu0 0
    %72 = vmatprep.subr.bf16.mxu0 0
    %73 = vmatpush1.bf16.msra.mxu0 0
    %74 = vmatprep.subr.bf16.mxu0 0
    %75 = vmatpush1.bf16.msra.mxu0 0
    %76 = vmatprep.subr.bf16.mxu0 0
    %77 = vmatpush1.bf16.msra.mxu0 0
    %78 = vmatprep.subr.bf16.mxu0 0
    %79 = vmatpush1.bf16.msra.mxu0 0
    %80 = vmatprep.subr.bf16.mxu0 0
    %81 = vmatpush1.bf16.msra.mxu0 0
    %82 = vmatprep.subr.bf16.mxu0 0
    %83 = vmatpush1.bf16.msra.mxu0 0
    %84 = vmatprep.subr.bf16.mxu0 0
    %85 = vmatpush1.bf16.msra.mxu0 0
    %86 = vmatprep.subr.bf16.mxu0 0
    %87 = vmatpush1.bf16.msra.mxu0 0
    %88 = vmatprep.subr.bf16.mxu0 0
    %89 = vmatpush1.bf16.msra.mxu0 0
    %90 = vmatprep.mubr.bf16.mxu0 0
    %91 = vmatmul.mubr.bf16.gmra.mrb[0].mxu0 %v56
    %v92 = vpop.f32.mrb[0].mxu0
    %v93 = vadd.f32 %v40, %v92
    %v94 = vpop.f32.mrb[0].mxu0
    %v95 = vpop.f32.mrb[0].mxu0
    %v96 = vadd.f32 %v40, %v95
    %v97 = vpop.f32.mrb[0].mxu0
    %98 = vdwg.mxu0
    %v99 = vmax.f32 %v93, 0.0
    %v100 = vmax.f32 %v96, 0.0
    %v101 = vld [vmem:[%s3] sm:$0x1]
    %v103 = vlaneseq
    %v104 = vshrl.u32 %v103, 7
    %v105 = vsub.s32 0, %v104
    %v106 = vrot.slane %v101, %v105
    %v108 = vmul.f32 %v99, %v106
    %v109 = vmul.f32 %v100, %v106
    %v110 = vpack.c.bf16 %v109, %v108
    %v111 = vld [vmem:[%s4] sm:$0xf]
    %v112 = vld [vmem:[%s4 + $0x4] sm:$0xf]
    %v113 = vld [vmem:[%s4 + $0x8] sm:$0xf]
    %v114 = vld [vmem:[%s4 + $0xc] sm:$0xf]
    %v115 = vld [vmem:[%s4 + $0x10] sm:$0xf]
    %v116 = vld [vmem:[%s4 + $0x14] sm:$0xf]
    %v117 = vld [vmem:[%s4 + $0x18] sm:$0xf]
    %v118 = vld [vmem:[%s4 + $0x1c] sm:$0xf]
    %v119 = vld [vmem:[%s4 + $0x20] sm:$0xf]
    %v120 = vld [vmem:[%s4 + $0x24] sm:$0xf]
    %v121 = vld [vmem:[%s4 + $0x28] sm:$0xf]
    %v122 = vld [vmem:[%s4 + $0x2c] sm:$0xf]
    %v123 = vld [vmem:[%s4 + $0x30] sm:$0xf]
    %v124 = vld [vmem:[%s4 + $0x34] sm:$0xf]
    %v125 = vld [vmem:[%s4 + $0x38] sm:$0xf]
    %v126 = vld [vmem:[%s4 + $0x3c] sm:$0xf]
    %v127 = vld [vmem:[%s5] sm:$0x1]
    %v129 = vlaneseq
    %v130 = vshrl.u32 %v129, 7
    %v131 = vsub.s32 0, %v130
    %v132 = vrot.slane %v127, %v131
    %v150 = vunpack.c.l.b16 %v111
    %v151 = vunpack.c.l.b16 %v112
    %v152 = vunpack.c.l.b16 %v113
    %v153 = vunpack.c.l.b16 %v114
    %v154 = vunpack.c.l.b16 %v115
    %v155 = vunpack.c.l.b16 %v116
    %v156 = vunpack.c.l.b16 %v117
    %v157 = vunpack.c.l.b16 %v118
    %v158 = vunpack.c.l.b16 %v119
    %v159 = vunpack.c.l.b16 %v120
    %v160 = vunpack.c.l.b16 %v121
    %v161 = vunpack.c.l.b16 %v122
    %v162 = vunpack.c.l.b16 %v123
    %v163 = vunpack.c.l.b16 %v124
    %v164 = vunpack.c.l.b16 %v125
    %v165 = vunpack.c.l.b16 %v126
    %v166 = vpack.c.b16 %v151, %v150
    %v167 = vpack.c.b16 %v153, %v152
    %v168 = vpack.c.b16 %v155, %v154
    %v169 = vpack.c.b16 %v157, %v156
    %v170 = vpack.c.b16 %v159, %v158
    %v171 = vpack.c.b16 %v161, %v160
    %v172 = vpack.c.b16 %v163, %v162
    %v173 = vpack.c.b16 %v165, %v164
    %182 = vmatprep.subr.bf16.mxu0 0
    %183 = vmatpush1.bf16.msra.mxu0 %v166
    %184 = vmatprep.subr.bf16.mxu0 0
    %185 = vmatpush1.bf16.msra.mxu0 %v167
    %186 = vmatprep.subr.bf16.mxu0 0
    %187 = vmatpush1.bf16.msra.mxu0 %v168
    %188 = vmatprep.subr.bf16.mxu0 0
    %189 = vmatpush1.bf16.msra.mxu0 %v169
    %190 = vmatprep.subr.bf16.mxu0 0
    %191 = vmatpush1.bf16.msra.mxu0 %v170
    %192 = vmatprep.subr.bf16.mxu0 0
    %193 = vmatpush1.bf16.msra.mxu0 %v171
    %194 = vmatprep.subr.bf16.mxu0 0
    %195 = vmatpush1.bf16.msra.mxu0 %v172
    %196 = vmatprep.subr.bf16.mxu0 0
    %197 = vmatpush1.bf16.msra.mxu0 %v173
    %198 = vmatprep.subr.bf16.mxu0 0
    %199 = vmatpush1.bf16.msra.mxu0 0
    %200 = vmatprep.subr.bf16.mxu0 0
    %201 = vmatpush1.bf16.msra.mxu0 0
    %202 = vmatprep.subr.bf16.mxu0 0
    %203 = vmatpush1.bf16.msra.mxu0 0
    %204 = vmatprep.subr.bf16.mxu0 0
    %205 = vmatpush1.bf16.msra.mxu0 0
    %206 = vmatprep.subr.bf16.mxu0 0
    %207 = vmatpush1.bf16.msra.mxu0 0
    %208 = vmatprep.subr.bf16.mxu0 0
    %209 = vmatpush1.bf16.msra.mxu0 0
    %210 = vmatprep.subr.bf16.mxu0 0
    %211 = vmatpush1.bf16.msra.mxu0 0
    %212 = vmatprep.subr.bf16.mxu0 0
    %213 = vmatpush1.bf16.msra.mxu0 0
    %214 = vmatprep.mubr.bf16.mxu0 0
    %215 = vmatmul.mubr.bf16.gmra.mrb[0].mxu0 %v110
    %v216 = vpop.f32.mrb[0].mxu0
    %v217 = vadd.f32 %v132, %v216
    %v218 = vpop.f32.mrb[0].mxu0
    %v219 = vpop.f32.mrb[0].mxu0
    %v220 = vadd.f32 %v132, %v219
    %v221 = vpop.f32.mrb[0].mxu0
    %222 = vdwg.mxu0
    %v223 = vmax.f32 %v217, 0.0
    %v224 = vmax.f32 %v220, 0.0
    %v225 = vld [vmem:[%s6] sm:$0x1]
    %v227 = vlaneseq
    %v228 = vshrl.u32 %v227, 7
    %v229 = vsub.s32 0, %v228
    %v230 = vrot.slane %v225, %v229
    %v232 = vmul.f32 %v223, %v230
    %v233 = vmul.f32 %v224, %v230
    %v234 = vadd.f32 %v28, %v232
    %v235 = vadd.f32 %v29, %v233
    %236 = vst.msk [vmem:[#allocation2] sm:$0xff] %vm54, %v234
    %237 = vst.msk [vmem:[#allocation2 + $0x8] sm:$0xff] %vm54, %v235
    // Predicated region
    $region30: #{tpu_custom_call.1} parent=1 // pred_check
      _
    $region31: #{tpu_custom_call.1} parent=1 // pred_check_branch
      %239 = sbr.rel (0) target = $region33
    $region32: #{tpu_custom_call.1} parent=1 // pred_region
      %s241 = ssub.s32 256, 256
      %242 = vsyncadd [#allocation3], %s241
      %s243 = sshll.u32 [#allocation2], 4
      %s244 = int_to_ptr.vmem [resolvable:$true] %s243
      %249 = dma.vmem_to_hbm [thread:$0]  %s244, 256, %s7, [#allocation3], 128, 128, 8
    $region33: #{tpu_custom_call.1} parent=1 // pred_fallthru
      _
    // Predicated region
    $region34: #{tpu_custom_call.1} parent=1 // pred_check
      _
    $region35: #{tpu_custom_call.1} parent=1 // pred_check_branch
      %251 = sbr.rel (0) target = $region37
    $region36: #{tpu_custom_call.1} parent=1 // pred_region
      %252 = dma.done [#allocation3], 256
    $region37: #{tpu_custom_call.1} parent=1 // pred_fallthru
      _
    %253 = vsyncpa [#allocation3], 1

</llo_original>
